<compile_context>
chip_gen: v7x
topology: tpu7x:2x2x1
jax: 0.10.0
libtpu: 0.0.40
codegen_flags: <defaults>
</compile_context>

<pallas_src>
import functools

import jax
import jax.numpy as jnp
from jax.experimental import pallas as pl
from jax.experimental.pallas import tpu as pltpu

_LANE = 128
_SUBLANE = 8


def _round_up(x: int, m: int) -> int:
    return (x + m - 1) // m * m


def _mlp_kernel(*refs, n_layers: int, apply_relu: bool):
    """Fused MLP body.

    refs layout: (x_ref, w0_ref, b0_ref, w1_ref, b1_ref, ..., o_ref)
      x_ref : (tm, d_in)           f32 batch tile
      wi_ref: (d_i_pad, d_{i+1}_pad) bf16, pre-transposed (in, out), zero-padded
      bi_ref: (1, d_{i+1}_pad)     f32, zero-padded
      o_ref : (tm, d_out_pad)      f32, lane-dense (multiple of 128)
    """
    x_ref = refs[0]
    o_ref = refs[-1]

    # bf16 operands feed the MXU natively on v5e/v6e/v7x; accumulate in f32.
    h = x_ref[...].astype(jnp.bfloat16)
    for i in range(n_layers):
        w = refs[1 + 2 * i][...]
        b = refs[2 + 2 * i][...]
        acc = jnp.dot(h, w, preferred_element_type=jnp.float32) + b  # f32 epilogue
        # Dropout(p=0) -> identity: nothing to do.
        h = acc.astype(jnp.bfloat16) if i + 1 < n_layers else acc
    if apply_relu:
        h = jnp.maximum(h, 0.0)
    o_ref[...] = h.astype(o_ref.dtype)


def init_mlp_params(key, in_dim, linear_units):
    """torch.nn.Linear-style init (U[-1/sqrt(fan_in), +1/sqrt(fan_in)]), weights
    stored PRE-TRANSPOSED as (d_in, d_out) so no per-forward transpose is needed."""
    params = []
    dims = [in_dim] + list(linear_units)
    for d0, d1 in zip(dims[:-1], dims[1:]):
        key, kw, kb = jax.random.split(key, 3)
        bound = 1.0 / jnp.sqrt(jnp.float32(d0))
        w = jax.random.uniform(kw, (d0, d1), jnp.float32, -bound, bound)
        b = jax.random.uniform(kb, (d1,), jnp.float32, -bound, bound)
        params.append((w, b))
    return params


def prepare_params(params):
    """One-time preprocessing (do NOT repeat per forward):
      * pad each layer's OUTPUT dim to a multiple of 128 with zeros (lane-dense);
        each subsequent layer's input dim is padded to match (zero rows), which is
        mathematically exact for Linear (+ trailing ReLU).
      * cast weights to bf16 (MXU operands); biases stay f32 (f32 epilogue).
    Returns (prepared_params, true_output_dim)."""
    prepared = []
    d_prev = params[0][0].shape[0]          # layer-0 input dim stays unpadded
    for li, (w, b) in enumerate(params):
        d0, d1 = w.shape
        d1_pad = _round_up(d1, _LANE)
        w_p = jnp.zeros((d_prev, d1_pad), jnp.bfloat16)
        w_p = w_p.at[:d0, :d1].set(w.astype(jnp.bfloat16))
        b_p = jnp.zeros((1, d1_pad), jnp.float32)
        b_p = b_p.at[0, :d1].set(b.astype(jnp.float32))
        prepared.append((w_p, b_p))
        d_prev = d1_pad
    return prepared, params[-1][0].shape[1]


def mlp_forward(x, prepared, d_out, use_final_activation=True, block_m=512):
    """Fused equivalent of MLP(in_dim, linear_units, activation=ReLU, dropout=0).

    x:        (B, d_in) float32
    prepared: output of prepare_params (bf16, lane-padded weights)
    d_out:    true (unpadded) output width
    """
    B, d_in = x.shape
    n_layers = len(prepared)
    d_out_pad = prepared[-1][0].shape[1]
    assert prepared[0][0].shape[0] == d_in

    # ---------------- generation-aware VMEM budget ----------------
    vmem_cap = 64 * 1024 * 1024  # conservative (v7x per-TC) fallback
    try:
        vmem_cap = int(pltpu.get_tpu_info().vmem_capacity_bytes)
    except Exception:
        pass
    # ~100 MiB on 128-MiB v5e/v6e; ~48 MiB on 64-MiB-per-TC v7x.
    vmem_limit = max(32 * 1024 * 1024,
                     min(vmem_cap - 16 * 1024 * 1024, 100 * 1024 * 1024))

    weight_bytes = sum(w.size * w.dtype.itemsize + b.size * b.dtype.itemsize
                       for w, b in prepared)
    max_width = max(d_in, max(w.shape[1] for w, _ in prepared))
    # Per-row VMEM: double-buffered x tile (f32) + double-buffered out tile (f32)
    # + unrolled f32/bf16 intermediate activations.
    per_row = 2 * d_in * 4 + 2 * d_out_pad * 4 + max_width * 8
    overhead = 2 * 1024 * 1024
    # Budget the weight stack at 2 buffers even though we request Buffered(1)
    # (conservative: covers the no-pipeline_mode fallback).
    avail = vmem_limit - 2 * weight_bytes - overhead
    assert avail >= per_row * _SUBLANE, (
        "weight stack too large for the fused single-kernel path; "
        "TODO(synk): per-layer (M,N,K)-tiled fallback")
    max_tm = max(_SUBLANE, (avail // per_row) // _SUBLANE * _SUBLANE)

    # ---------------- batch (M) tiling ----------------
    B8 = _round_up(B, _SUBLANE)
    tm_cap = min(block_m, max_tm, B8)
    if B8 > _SUBLANE:
        # >=2 grid steps so the "parallel" axis can shard across v7x's 2 TCs.
        tm_cap = min(tm_cap, _round_up(pl.cdiv(B8, 2), _SUBLANE))
    tm_cap = max(tm_cap, _SUBLANE)
    # Prefer a tm that exactly divides the (sublane-rounded) batch -> no jnp.pad
    # (no extra HBM copy of x, no dead MXU rows).
    tm_div, t = _SUBLANE, _SUBLANE
    while t <= tm_cap:
        if B8 % t == 0:
            tm_div = t
        t += _SUBLANE
    if tm_div * 2 >= tm_cap:
        tm, B_pad = tm_div, B8
    else:
        tm = tm_cap
        B_pad = _round_up(B, tm)
    if B_pad != B:
        x = jnp.pad(x, ((0, B_pad - B), (0, 0)))
    grid = (B_pad // tm,)

    kernel = functools.partial(_mlp_kernel, n_layers=n_layers,
                               apply_relu=use_final_activation)

    def _call(buffered: bool):
        spec_kwargs = dict(pipeline_mode=pl.Buffered(1)) if buffered else {}
        flat_inputs = [x]
        in_specs = [pl.BlockSpec((tm, d_in), lambda i: (i, 0))]
        for w, b in prepared:
            d0, d1 = w.shape
            flat_inputs.append(w)
            flat_inputs.append(b)
            # constant index_map -> tile stays VMEM-resident across grid steps;
            # Buffered(1) -> single buffer (never re-fetched).
            in_specs.append(pl.BlockSpec((d0, d1), lambda i: (0, 0), **spec_kwargs))
            in_specs.append(pl.BlockSpec((1, d1), lambda i: (0, 0), **spec_kwargs))
        return pl.pallas_call(
            kernel,
            out_shape=jax.ShapeDtypeStruct((B_pad, d_out_pad), x.dtype),
            grid_spec=pltpu.PrefetchScalarGridSpec(
                num_scalar_prefetch=0,
                grid=grid,
                in_specs=in_specs,
                out_specs=pl.BlockSpec((tm, d_out_pad), lambda i: (i, 0)),
            ),
            compiler_params=pltpu.CompilerParams(
                dimension_semantics=("parallel",),
                vmem_limit_bytes=vmem_limit,
            ),
        )(*flat_inputs)

    try:
        out = _call(buffered=True)
        out = jax.block_until_ready(out)
    except Exception:
        # pipeline_mode=pl.Buffered(1) unsupported on this jax version ->
        # default double-buffered weights (costs VMEM only, same semantics).
        out = _call(buffered=False)

    return out[:B, :d_out]


if __name__ == "__main__":
    key = jax.random.PRNGKey(0)
    batch = 8
    in_dim = 32
    linear_units = [64, 32, 16]

    key, kx = jax.random.split(key)
    x = jax.random.normal(kx, (batch, in_dim), jnp.float32)

    params = init_mlp_params(key, in_dim, linear_units)
    prepared, d_out = prepare_params(params)

    out = mlp_forward(x, prepared, d_out, use_final_activation=True)
    out = jax.block_until_ready(out)

    # Reference emulating the same numeric path as the kernel
    # (bf16 MXU operands, f32 accumulation, bf16 between layers, f32 epilogue):
    # Linear -> Dropout(0) per layer, single ReLU appended at the end.
    h = x.astype(jnp.bfloat16)
    for i, (w, b) in enumerate(params):
        acc = jnp.dot(h.astype(jnp.float32),
                      w.astype(jnp.bfloat16).astype(jnp.float32)) + b
        h = acc.astype(jnp.bfloat16) if i + 1 < len(params) else acc
    ref = jnp.maximum(h, 0.0)

    assert out.shape == (batch, linear_units[-1])
    assert jnp.allclose(out, ref, atol=1e-2, rtol=1e-2), \
        float(jnp.max(jnp.abs(out - ref)))

    print("KERNEL_OK")
</pallas_src>

<mosaic_0001>
module attributes {stable_mosaic.version = 11 : i64} {
  func.func @_mlp_kernel(%arg0: i32, %arg1: memref<8x32xf32, #tpu.memory_space<vmem>>, %arg2: memref<32x128xbf16, #tpu.memory_space<vmem>>, %arg3: memref<1x128xf32, #tpu.memory_space<vmem>>, %arg4: memref<128x128xbf16, #tpu.memory_space<vmem>>, %arg5: memref<1x128xf32, #tpu.memory_space<vmem>>, %arg6: memref<128x128xbf16, #tpu.memory_space<vmem>>, %arg7: memref<1x128xf32, #tpu.memory_space<vmem>>, %arg8: memref<8x128xf32, #tpu.memory_space<vmem>>) attributes {dimension_semantics = [#tpu.dimension_semantics<parallel>], iteration_bounds = array<i64: 1>, scalar_prefetch = 0 : i64, scratch_operands = 0 : i64, tpu.core_type = #tpu.core_type<tc>, window_params = [{transform_indices = @transform_0, window_bounds = array<i64: 8, 32>}, {pipeline_mode = #tpu.pipeline_mode<synchronous>, transform_indices = @transform_1, window_bounds = array<i64: 32, 128>}, {pipeline_mode = #tpu.pipeline_mode<synchronous>, transform_indices = @transform_2, window_bounds = array<i64: 1, 128>}, {pipeline_mode = #tpu.pipeline_mode<synchronous>, transform_indices = @transform_3, window_bounds = array<i64: 128, 128>}, {pipeline_mode = #tpu.pipeline_mode<synchronous>, transform_indices = @transform_4, window_bounds = array<i64: 1, 128>}, {pipeline_mode = #tpu.pipeline_mode<synchronous>, transform_indices = @transform_5, window_bounds = array<i64: 128, 128>}, {pipeline_mode = #tpu.pipeline_mode<synchronous>, transform_indices = @transform_6, window_bounds = array<i64: 1, 128>}, {transform_indices = @transform_7, window_bounds = array<i64: 8, 128>}]} {
    %c0 = arith.constant 0 : index
    %c0_0 = arith.constant 0 : index
    %0 = vector.load %arg1[%c0, %c0_0] : memref<8x32xf32, #tpu.memory_space<vmem>>, vector<8x32xf32>
    %1 = arith.truncf %0 : vector<8x32xf32> to vector<8x32xbf16>
    %c0_1 = arith.constant 0 : index
    %c0_2 = arith.constant 0 : index
    %2 = vector.load %arg2[%c0_1, %c0_2] : memref<32x128xbf16, #tpu.memory_space<vmem>>, vector<32x128xbf16>
    %c0_3 = arith.constant 0 : index
    %c0_4 = arith.constant 0 : index
    %3 = vector.load %arg3[%c0_3, %c0_4] : memref<1x128xf32, #tpu.memory_space<vmem>>, vector<1x128xf32>
    %cst = arith.constant dense<0.000000e+00> : vector<8x128xf32>
    %4 = tpu.matmul %1, %2, %cst {dimension_numbers = #tpu.dot_dimension_numbers<[1], [0], [0], [1], [0, 0, 1, 1], [], []>} : vector<8x32xbf16>, vector<32x128xbf16>, vector<8x128xf32> -> vector<8x128xf32>
    %5 = vector.broadcast %3 : vector<1x128xf32> to vector<8x128xf32>
    %6 = arith.addf %4, %5 : vector<8x128xf32>
    %7 = arith.truncf %6 : vector<8x128xf32> to vector<8x128xbf16>
    %c0_5 = arith.constant 0 : index
    %c0_6 = arith.constant 0 : index
    %8 = vector.load %arg4[%c0_5, %c0_6] : memref<128x128xbf16, #tpu.memory_space<vmem>>, vector<128x128xbf16>
    %c0_7 = arith.constant 0 : index
    %c0_8 = arith.constant 0 : index
    %9 = vector.load %arg5[%c0_7, %c0_8] : memref<1x128xf32, #tpu.memory_space<vmem>>, vector<1x128xf32>
    %cst_9 = arith.constant dense<0.000000e+00> : vector<8x128xf32>
    %10 = tpu.matmul %7, %8, %cst_9 {dimension_numbers = #tpu.dot_dimension_numbers<[1], [0], [0], [1], [0, 0, 1, 1], [], []>} : vector<8x128xbf16>, vector<128x128xbf16>, vector<8x128xf32> -> vector<8x128xf32>
    %11 = vector.broadcast %9 : vector<1x128xf32> to vector<8x128xf32>
    %12 = arith.addf %10, %11 : vector<8x128xf32>
    %13 = arith.truncf %12 : vector<8x128xf32> to vector<8x128xbf16>
    %c0_10 = arith.constant 0 : index
    %c0_11 = arith.constant 0 : index
    %14 = vector.load %arg6[%c0_10, %c0_11] : memref<128x128xbf16, #tpu.memory_space<vmem>>, vector<128x128xbf16>
    %c0_12 = arith.constant 0 : index
    %c0_13 = arith.constant 0 : index
    %15 = vector.load %arg7[%c0_12, %c0_13] : memref<1x128xf32, #tpu.memory_space<vmem>>, vector<1x128xf32>
    %cst_14 = arith.constant dense<0.000000e+00> : vector<8x128xf32>
    %16 = tpu.matmul %13, %14, %cst_14 {dimension_numbers = #tpu.dot_dimension_numbers<[1], [0], [0], [1], [0, 0, 1, 1], [], []>} : vector<8x128xbf16>, vector<128x128xbf16>, vector<8x128xf32> -> vector<8x128xf32>
    %17 = vector.broadcast %15 : vector<1x128xf32> to vector<8x128xf32>
    %18 = arith.addf %16, %17 : vector<8x128xf32>
    %cst_15 = arith.constant 0.000000e+00 : f32
    %19 = vector.broadcast %cst_15 : f32 to vector<8x128xf32>
    %20 = arith.maximumf %18, %19 : vector<8x128xf32>
    %c0_16 = arith.constant 0 : index
    %c0_17 = arith.constant 0 : index
    %21 = vector.load %arg8[%c0_16, %c0_17] : memref<8x128xf32, #tpu.memory_space<vmem>>, vector<8x128xf32>
    tpu.vector_store %arg8[%c0_16, %c0_17], %20 {strides = array<i32>} : memref<8x128xf32, #tpu.memory_space<vmem>>, vector<8x128xf32>,
    return
  }
  func.func @transform_0(%arg0: i32) -> (i32, i32) {
    %c0_i32 = arith.constant 0 : i32
    %c0_i32_0 = arith.constant 0 : i32
    return %arg0, %c0_i32 : i32, i32
  }
  func.func @transform_1(%arg0: i32) -> (i32, i32) {
    %c0_i32 = arith.constant 0 : i32
    %c0_i32_0 = arith.constant 0 : i32
    %c0_i32_1 = arith.constant 0 : i32
    return %c0_i32, %c0_i32_0 : i32, i32
  }
  func.func @transform_2(%arg0: i32) -> (i32, i32) {
    %c0_i32 = arith.constant 0 : i32
    %c0_i32_0 = arith.constant 0 : i32
    %c0_i32_1 = arith.constant 0 : i32
    return %c0_i32, %c0_i32_0 : i32, i32
  }
  func.func @transform_3(%arg0: i32) -> (i32, i32) {
    %c0_i32 = arith.constant 0 : i32
    %c0_i32_0 = arith.constant 0 : i32
    %c0_i32_1 = arith.constant 0 : i32
    return %c0_i32, %c0_i32_0 : i32, i32
  }
  func.func @transform_4(%arg0: i32) -> (i32, i32) {
    %c0_i32 = arith.constant 0 : i32
    %c0_i32_0 = arith.constant 0 : i32
    %c0_i32_1 = arith.constant 0 : i32
    return %c0_i32, %c0_i32_0 : i32, i32
  }
  func.func @transform_5(%arg0: i32) -> (i32, i32) {
    %c0_i32 = arith.constant 0 : i32
    %c0_i32_0 = arith.constant 0 : i32
    %c0_i32_1 = arith.constant 0 : i32
    return %c0_i32, %c0_i32_0 : i32, i32
  }
  func.func @transform_6(%arg0: i32) -> (i32, i32) {
    %c0_i32 = arith.constant 0 : i32
    %c0_i32_0 = arith.constant 0 : i32
    %c0_i32_1 = arith.constant 0 : i32
    return %c0_i32, %c0_i32_0 : i32, i32
  }
  func.func @transform_7(%arg0: i32) -> (i32, i32) {
    %c0_i32 = arith.constant 0 : i32
    %c0_i32_0 = arith.constant 0 : i32
    return %arg0, %c0_i32 : i32, i32
  }
}

module attributes {stable_mosaic.version = 11 : i64} {
  func.func @_mlp_kernel(%arg0: i32, %arg1: memref<8x32xf32, #tpu.memory_space<vmem>>, %arg2: memref<32x128xbf16, #tpu.memory_space<vmem>>, %arg3: memref<1x128xf32, #tpu.memory_space<vmem>>, %arg4: memref<128x128xbf16, #tpu.memory_space<vmem>>, %arg5: memref<1x128xf32, #tpu.memory_space<vmem>>, %arg6: memref<128x128xbf16, #tpu.memory_space<vmem>>, %arg7: memref<1x128xf32, #tpu.memory_space<vmem>>, %arg8: memref<8x128xf32, #tpu.memory_space<vmem>>) attributes {dimension_semantics = [#tpu.dimension_semantics<parallel>], iteration_bounds = array<i64: 1>, scalar_prefetch = 0 : i64, scratch_operands = 0 : i64, tpu.core_type = #tpu.core_type<tc>, window_params = [{transform_indices = @transform_0, window_bounds = array<i64: 8, 32>}, {pipeline_mode = #tpu.pipeline_mode<synchronous>, transform_indices = @transform_1, window_bounds = array<i64: 32, 128>}, {pipeline_mode = #tpu.pipeline_mode<synchronous>, transform_indices = @transform_2, window_bounds = array<i64: 1, 128>}, {pipeline_mode = #tpu.pipeline_mode<synchronous>, transform_indices = @transform_3, window_bounds = array<i64: 128, 128>}, {pipeline_mode = #tpu.pipeline_mode<synchronous>, transform_indices = @transform_4, window_bounds = array<i64: 1, 128>}, {pipeline_mode = #tpu.pipeline_mode<synchronous>, transform_indices = @transform_5, window_bounds = array<i64: 128, 128>}, {pipeline_mode = #tpu.pipeline_mode<synchronous>, transform_indices = @transform_6, window_bounds = array<i64: 1, 128>}, {transform_indices = @transform_7, window_bounds = array<i64: 8, 128>}]} {
    %c0 = arith.constant 0 : index
    %c0_0 = arith.constant 0 : index
    %0 = vector.load %arg1[%c0, %c0_0] : memref<8x32xf32, #tpu.memory_space<vmem>>, vector<8x32xf32>
    %1 = arith.truncf %0 : vector<8x32xf32> to vector<8x32xbf16>
    %c0_1 = arith.constant 0 : index
    %c0_2 = arith.constant 0 : index
    %2 = vector.load %arg2[%c0_1, %c0_2] : memref<32x128xbf16, #tpu.memory_space<vmem>>, vector<32x128xbf16>
    %c0_3 = arith.constant 0 : index
    %c0_4 = arith.constant 0 : index
    %3 = vector.load %arg3[%c0_3, %c0_4] : memref<1x128xf32, #tpu.memory_space<vmem>>, vector<1x128xf32>
    %cst = arith.constant dense<0.000000e+00> : vector<8x128xf32>
    %4 = tpu.matmul %1, %2, %cst {dimension_numbers = #tpu.dot_dimension_numbers<[1], [0], [0], [1], [0, 0, 1, 1], [], []>} : vector<8x32xbf16>, vector<32x128xbf16>, vector<8x128xf32> -> vector<8x128xf32>
    %5 = vector.broadcast %3 : vector<1x128xf32> to vector<8x128xf32>
    %6 = arith.addf %4, %5 : vector<8x128xf32>
    %7 = arith.truncf %6 : vector<8x128xf32> to vector<8x128xbf16>
    %c0_5 = arith.constant 0 : index
    %c0_6 = arith.constant 0 : index
    %8 = vector.load %arg4[%c0_5, %c0_6] : memref<128x128xbf16, #tpu.memory_space<vmem>>, vector<128x128xbf16>
    %c0_7 = arith.constant 0 : index
    %c0_8 = arith.constant 0 : index
    %9 = vector.load %arg5[%c0_7, %c0_8] : memref<1x128xf32, #tpu.memory_space<vmem>>, vector<1x128xf32>
    %cst_9 = arith.constant dense<0.000000e+00> : vector<8x128xf32>
    %10 = tpu.matmul %7, %8, %cst_9 {dimension_numbers = #tpu.dot_dimension_numbers<[1], [0], [0], [1], [0, 0, 1, 1], [], []>} : vector<8x128xbf16>, vector<128x128xbf16>, vector<8x128xf32> -> vector<8x128xf32>
    %11 = vector.broadcast %9 : vector<1x128xf32> to vector<8x128xf32>
    %12 = arith.addf %10, %11 : vector<8x128xf32>
    %13 = arith.truncf %12 : vector<8x128xf32> to vector<8x128xbf16>
    %c0_10 = arith.constant 0 : index
    %c0_11 = arith.constant 0 : index
    %14 = vector.load %arg6[%c0_10, %c0_11] : memref<128x128xbf16, #tpu.memory_space<vmem>>, vector<128x128xbf16>
    %c0_12 = arith.constant 0 : index
    %c0_13 = arith.constant 0 : index
    %15 = vector.load %arg7[%c0_12, %c0_13] : memref<1x128xf32, #tpu.memory_space<vmem>>, vector<1x128xf32>
    %cst_14 = arith.constant dense<0.000000e+00> : vector<8x128xf32>
    %16 = tpu.matmul %13, %14, %cst_14 {dimension_numbers = #tpu.dot_dimension_numbers<[1], [0], [0], [1], [0, 0, 1, 1], [], []>} : vector<8x128xbf16>, vector<128x128xbf16>, vector<8x128xf32> -> vector<8x128xf32>
    %17 = vector.broadcast %15 : vector<1x128xf32> to vector<8x128xf32>
    %18 = arith.addf %16, %17 : vector<8x128xf32>
    %cst_15 = arith.constant 0.000000e+00 : f32
    %19 = vector.broadcast %cst_15 : f32 to vector<8x128xf32>
    %20 = arith.maximumf %18, %19 : vector<8x128xf32>
    %c0_16 = arith.constant 0 : index
    %c0_17 = arith.constant 0 : index
    %21 = vector.load %arg8[%c0_16, %c0_17] : memref<8x128xf32, #tpu.memory_space<vmem>>, vector<8x128xf32>
    tpu.vector_store %arg8[%c0_16, %c0_17], %20 {strides = array<i32>} : memref<8x128xf32, #tpu.memory_space<vmem>>, vector<8x128xf32>,
    return
  }
  func.func @transform_0(%arg0: i32) -> (i32, i32) {
    %c0_i32 = arith.constant 0 : i32
    %c0_i32_0 = arith.constant 0 : i32
    return %arg0, %c0_i32 : i32, i32
  }
  func.func @transform_1(%arg0: i32) -> (i32, i32) {
    %c0_i32 = arith.constant 0 : i32
    %c0_i32_0 = arith.constant 0 : i32
    %c0_i32_1 = arith.constant 0 : i32
    return %c0_i32, %c0_i32_0 : i32, i32
  }
  func.func @transform_2(%arg0: i32) -> (i32, i32) {
    %c0_i32 = arith.constant 0 : i32
    %c0_i32_0 = arith.constant 0 : i32
    %c0_i32_1 = arith.constant 0 : i32
    return %c0_i32, %c0_i32_0 : i32, i32
  }
  func.func @transform_3(%arg0: i32) -> (i32, i32) {
    %c0_i32 = arith.constant 0 : i32
    %c0_i32_0 = arith.constant 0 : i32
    %c0_i32_1 = arith.constant 0 : i32
    return %c0_i32, %c0_i32_0 : i32, i32
  }
  func.func @transform_4(%arg0: i32) -> (i32, i32) {
    %c0_i32 = arith.constant 0 : i32
    %c0_i32_0 = arith.constant 0 : i32
    %c0_i32_1 = arith.constant 0 : i32
    return %c0_i32, %c0_i32_0 : i32, i32
  }
  func.func @transform_5(%arg0: i32) -> (i32, i32) {
    %c0_i32 = arith.constant 0 : i32
    %c0_i32_0 = arith.constant 0 : i32
    %c0_i32_1 = arith.constant 0 : i32
    return %c0_i32, %c0_i32_0 : i32, i32
  }
  func.func @transform_6(%arg0: i32) -> (i32, i32) {
    %c0_i32 = arith.constant 0 : i32
    %c0_i32_0 = arith.constant 0 : i32
    %c0_i32_1 = arith.constant 0 : i32
    return %c0_i32, %c0_i32_0 : i32, i32
  }
  func.func @transform_7(%arg0: i32) -> (i32, i32) {
    %c0_i32 = arith.constant 0 : i32
    %c0_i32_0 = arith.constant 0 : i32
    return %arg0, %c0_i32 : i32, i32
  }
}

</mosaic_0001>

<llo_original>
// kernel: tpu_custom_call.1
$region0: #{tpu_custom_call.1}
  #allocation0 [shape = 'u32[]', space=smem, size = 0x4, offset = 0x4, fixed_abs, tag = 'smem constant byte address 0x4 - core index']
  #allocation1 [shape = 'u32[144,128]{1,0:T(1,128)}', space=vmem, size = 0x12000, scoped, tag = 'internal scratch']
  %s0 = inlined_call_operand.hbm [shape: f32[8,32], index: 0, kind: input, shape index: {}]
  %s1 = inlined_call_operand.hbm [shape: bf16[32,128], index: 1, kind: input, shape index: {}]
  %s2 = inlined_call_operand.vmem [shape: f32[1,128], index: 2, kind: input, shape index: {}]
  %s3 = inlined_call_operand.hbm [shape: bf16[128,128], index: 3, kind: input, shape index: {}]
  %s4 = inlined_call_operand.vmem [shape: f32[1,128], index: 4, kind: input, shape index: {}]
  %s5 = inlined_call_operand.hbm [shape: bf16[128,128], index: 5, kind: input, shape index: {}]
  %s6 = inlined_call_operand.vmem [shape: f32[1,128], index: 6, kind: input, shape index: {}]
  %s7 = inlined_call_operand.hbm [shape: f32[8,128], index: 7, kind: output, shape index: {}]
  %s8 = sld [smem:[#allocation0]]
  $region54: #{tpu_custom_call.1} parent=0
    _
  %s10 = ssub.s32 1, %s8
  %s11 = scalar_select 0, %s10, %s8
  $region1: #{tpu_custom_call.1} parent=0
    #allocation2 [shape = 'u8[4096]{0}', space=vmem, size = 0x1000, scoped, tag = 'input window, operand 0, single buffered']
    #allocation3 [shape = 's32[1]{0}', space=sflag, size = 0x4, scoped, tag = 'scoped memory for tpu_custom_call.1']
    #allocation4 [shape = 's32[1]{0}', space=sflag, size = 0x4, scoped, tag = 'scoped memory for tpu_custom_call.1']
    #allocation5 [shape = 'u8[8192]{0}', space=vmem, size = 0x2000, scoped, tag = 'input window, operand 1, single buffered']
    #allocation6 [shape = 's32[1]{0}', space=sflag, size = 0x4, scoped, tag = 'scoped memory for tpu_custom_call.1']
    #allocation7 [shape = 'u8[32768]{0}', space=vmem, size = 0x8000, scoped, tag = 'input window, operand 3, single buffered']
    #allocation8 [shape = 'u8[32768]{0}', space=vmem, size = 0x8000, scoped, tag = 'input window, operand 5, single buffered']
    #allocation9 [shape = 's32[1]{0}', space=sflag, size = 0x4, scoped, tag = 'scoped memory for tpu_custom_call.1']
    #allocation10 [shape = 'u8[4096]{0}', space=vmem, size = 0x1000, scoped, tag = 'output window, operand 0, single buffered']
    %12 = vsyncpa [#allocation3], 0
    %13 = vsyncpa [#allocation6], 0
    %14 = vsyncpa [#allocation9], 0
    %15 = vsyncpa [#allocation4], 0
    // Predicated region
    $region2: #{tpu_custom_call.1} parent=1 // pred_check
      _
    $region3: #{tpu_custom_call.1} parent=1 // pred_check_branch
      %17 = sbr.rel (0) target = $region5
    $region4: #{tpu_custom_call.1} parent=1 // pred_region
      %s19 = ssub.s32 128, 128
      %20 = vsyncadd [#allocation3], %s19
      %s22 = sshll.u32 [#allocation2], 4
      %s23 = int_to_ptr.vmem [resolvable:$true] %s22
      %25 = dma.hbm_to_vmem [thread:$0]  %s0, 128, %s23, [#allocation3]
    $region5: #{tpu_custom_call.1} parent=1 // pred_fallthru
      _
    // Predicated region
    $region6: #{tpu_custom_call.1} parent=1 // pred_check
      _
    $region7: #{tpu_custom_call.1} parent=1 // pred_check_branch
      %27 = sbr.rel (0) target = $region9
    $region8: #{tpu_custom_call.1} parent=1 // pred_region
      %s29 = ssub.s32 256, 256
      %30 = vsyncadd [#allocation6], %s29
      %s31 = sshll.u32 [#allocation5], 4
      %s32 = int_to_ptr.vmem [resolvable:$true] %s31
      %37 = dma.hbm_to_vmem [thread:$0]  %s1, 256, %s32, [#allocation6], 64, 64, 4
    $region9: #{tpu_custom_call.1} parent=1 // pred_fallthru
      _
    // Predicated region
    $region10: #{tpu_custom_call.1} parent=1 // pred_check
      _
    $region11: #{tpu_custom_call.1} parent=1 // pred_check_branch
      %39 = sbr.rel (0) target = $region13
    $region12: #{tpu_custom_call.1} parent=1 // pred_region
      _
    $region13: #{tpu_custom_call.1} parent=1 // pred_fallthru
      _
    // Predicated region
    $region14: #{tpu_custom_call.1} parent=1 // pred_check
      _
    $region15: #{tpu_custom_call.1} parent=1 // pred_check_branch
      %41 = sbr.rel (0) target = $region17
    $region16: #{tpu_custom_call.1} parent=1 // pred_region
      %s43 = ssub.s32 1024, 1024
      %44 = vsyncadd [#allocation6], %s43
      %s45 = sshll.u32 [#allocation7], 4
      %s46 = int_to_ptr.vmem [resolvable:$true] %s45
      %51 = dma.hbm_to_vmem [thread:$0]  %s3, 1024, %s46, [#allocation6], 64, 64, 4
    $region17: #{tpu_custom_call.1} parent=1 // pred_fallthru
      _
    // Predicated region
    $region18: #{tpu_custom_call.1} parent=1 // pred_check
      _
    $region19: #{tpu_custom_call.1} parent=1 // pred_check_branch
      %53 = sbr.rel (0) target = $region21
    $region20: #{tpu_custom_call.1} parent=1 // pred_region
      _
    $region21: #{tpu_custom_call.1} parent=1 // pred_fallthru
      _
    // Predicated region
    $region22: #{tpu_custom_call.1} parent=1 // pred_check
      _
    $region23: #{tpu_custom_call.1} parent=1 // pred_check_branch
      %55 = sbr.rel (0) target = $region25
    $region24: #{tpu_custom_call.1} parent=1 // pred_region
      %s57 = ssub.s32 1024, 1024
      %58 = vsyncadd [#allocation9], %s57
      %s59 = sshll.u32 [#allocation8], 4
      %s60 = int_to_ptr.vmem [resolvable:$true] %s59
      %65 = dma.hbm_to_vmem [thread:$0]  %s5, 1024, %s60, [#allocation9], 64, 64, 4
    $region25: #{tpu_custom_call.1} parent=1 // pred_fallthru
      _
    // Predicated region
    $region26: #{tpu_custom_call.1} parent=1 // pred_check
      _
    $region27: #{tpu_custom_call.1} parent=1 // pred_check_branch
      %67 = sbr.rel (0) target = $region29
    $region28: #{tpu_custom_call.1} parent=1 // pred_region
      _
    $region29: #{tpu_custom_call.1} parent=1 // pred_fallthru
      _
    // Predicated region
    $region30: #{tpu_custom_call.1} parent=1 // pred_check
      _
    $region31: #{tpu_custom_call.1} parent=1 // pred_check_branch
      %69 = sbr.rel (0) target = $region33
    $region32: #{tpu_custom_call.1} parent=1 // pred_region
      %70 = dma.done [#allocation3], 128
    $region33: #{tpu_custom_call.1} parent=1 // pred_fallthru
      _
    // Predicated region
    $region34: #{tpu_custom_call.1} parent=1 // pred_check
      _
    $region35: #{tpu_custom_call.1} parent=1 // pred_check_branch
      %72 = sbr.rel (0) target = $region37
    $region36: #{tpu_custom_call.1} parent=1 // pred_region
      %73 = dma.done [#allocation6], 256
    $region37: #{tpu_custom_call.1} parent=1 // pred_fallthru
      _
    // Predicated region
    $region38: #{tpu_custom_call.1} parent=1 // pred_check
      _
    $region39: #{tpu_custom_call.1} parent=1 // pred_check_branch
      %75 = sbr.rel (0) target = $region41
    $region40: #{tpu_custom_call.1} parent=1 // pred_region
      %76 = dma.done [#allocation6], 1024
    $region41: #{tpu_custom_call.1} parent=1 // pred_fallthru
      _
    // Predicated region
    $region42: #{tpu_custom_call.1} parent=1 // pred_check
      _
    $region43: #{tpu_custom_call.1} parent=1 // pred_check_branch
      %78 = sbr.rel (0) target = $region45
    $region44: #{tpu_custom_call.1} parent=1 // pred_region
      %79 = dma.done [#allocation9], 1024
    $region45: #{tpu_custom_call.1} parent=1 // pred_fallthru
      _
    %v81 = vld [vmem:[#allocation2] sm:$0xff]
    %v82 = vpack.c.bf16 %v81, %v81
    %v83 = vld [vmem:[#allocation5] sm:$0xf]
    %v84 = vld [vmem:[#allocation5 + $0x4] sm:$0xf]
    %v85 = vld [vmem:[#allocation5 + $0x8] sm:$0xf]
    %v86 = vld [vmem:[#allocation5 + $0xc] sm:$0xf]
    %v87 = vld [vmem:[%s2] sm:$0x1]
    %v89 = vlaneseq
    %v90 = vshrl.u32 %v89, 7
    %v91 = vsub.s32 0, %v90
    %v92 = vrot.slane %v87, %v91
    %v98 = vunpack.c.l.b16 %v83
    %v99 = vunpack.c.l.b16 %v84
    %v100 = vunpack.c.l.b16 %v85
    %v101 = vunpack.c.l.b16 %v86
    %v102 = vpack.c.b16 %v99, %v98
    %v103 = vpack.c.b16 %v101, %v100
    %vm106 = vcmask 261120
    %v108 = vsel %vm106, %v82, 0
    %110 = vmatprep.subr.bf16.mxu0 0
    %111 = vmatpush1.bf16.msra.mxu0 %v102
    %112 = vmatprep.subr.bf16.mxu0 0
    %113 = vmatpush1.bf16.msra.mxu0 %v103
    %114 = vmatprep.subr.bf16.mxu0 0
    %115 = vmatpush1.bf16.msra.mxu0 0
    %116 = vmatprep.subr.bf16.mxu0 0
    %117 = vmatpush1.bf16.msra.mxu0 0
    %118 = vmatprep.subr.bf16.mxu0 0
    %119 = vmatpush1.bf16.msra.mxu0 0
    %120 = vmatprep.subr.bf16.mxu0 0
    %121 = vmatpush1.bf16.msra.mxu0 0
    %122 = vmatprep.subr.bf16.mxu0 0
    %123 = vmatpush1.bf16.msra.mxu0 0
    %124 = vmatprep.subr.bf16.mxu0 0
    %125 = vmatpush1.bf16.msra.mxu0 0
    %126 = vmatprep.subr.bf16.mxu0 0
    %127 = vmatpush1.bf16.msra.mxu0 0
    %128 = vmatprep.subr.bf16.mxu0 0
    %129 = vmatpush1.bf16.msra.mxu0 0
    %130 = vmatprep.subr.bf16.mxu0 0
    %131 = vmatpush1.bf16.msra.mxu0 0
    %132 = vmatprep.subr.bf16.mxu0 0
    %133 = vmatpush1.bf16.msra.mxu0 0
    %134 = vmatprep.subr.bf16.mxu0 0
    %135 = vmatpush1.bf16.msra.mxu0 0
    %136 = vmatprep.subr.bf16.mxu0 0
    %137 = vmatpush1.bf16.msra.mxu0 0
    %138 = vmatprep.subr.bf16.mxu0 0
    %139 = vmatpush1.bf16.msra.mxu0 0
    %140 = vmatprep.subr.bf16.mxu0 0
    %141 = vmatpush1.bf16.msra.mxu0 0
    %142 = vmatprep.mubr.bf16.mxu0 0
    %143 = vmatmul.mubr.bf16.gmra.mrb[0].mxu0 %v108
    %v144 = vpop.f32.mrb[0].mxu0
    %v145 = vadd.f32 %v92, %v144
    %v146 = vpop.f32.mrb[0].mxu0
    %v147 = vpop.f32.mrb[0].mxu0
    %v148 = vpop.f32.mrb[0].mxu0
    %149 = vdwg.mxu0
    %v150 = vpack.c.bf16 %v145, %v145
    %v151 = vld [vmem:[#allocation7] sm:$0xf]
    %v152 = vld [vmem:[#allocation7 + $0x4] sm:$0xf]
    %v153 = vld [vmem:[#allocation7 + $0x8] sm:$0xf]
    %v154 = vld [vmem:[#allocation7 + $0xc] sm:$0xf]
    %v155 = vld [vmem:[#allocation7 + $0x10] sm:$0xf]
    %v156 = vld [vmem:[#allocation7 + $0x14] sm:$0xf]
    %v157 = vld [vmem:[#allocation7 + $0x18] sm:$0xf]
    %v158 = vld [vmem:[#allocation7 + $0x1c] sm:$0xf]
    %v159 = vld [vmem:[#allocation7 + $0x20] sm:$0xf]
    %v160 = vld [vmem:[#allocation7 + $0x24] sm:$0xf]
    %v161 = vld [vmem:[#allocation7 + $0x28] sm:$0xf]
    %v162 = vld [vmem:[#allocation7 + $0x2c] sm:$0xf]
    %v163 = vld [vmem:[#allocation7 + $0x30] sm:$0xf]
    %v164 = vld [vmem:[#allocation7 + $0x34] sm:$0xf]
    %v165 = vld [vmem:[#allocation7 + $0x38] sm:$0xf]
    %v166 = vld [vmem:[#allocation7 + $0x3c] sm:$0xf]
    %v167 = vld [vmem:[%s4] sm:$0x1]
    %v169 = vlaneseq
    %v170 = vshrl.u32 %v169, 7
    %v171 = vsub.s32 0, %v170
    %v172 = vrot.slane %v167, %v171
    %v190 = vunpack.c.l.b16 %v151
    %v191 = vunpack.c.l.b16 %v152
    %v192 = vunpack.c.l.b16 %v153
    %v193 = vunpack.c.l.b16 %v154
    %v194 = vunpack.c.l.b16 %v155
    %v195 = vunpack.c.l.b16 %v156
    %v196 = vunpack.c.l.b16 %v157
    %v197 = vunpack.c.l.b16 %v158
    %v198 = vunpack.c.l.b16 %v159
    %v199 = vunpack.c.l.b16 %v160
    %v200 = vunpack.c.l.b16 %v161
    %v201 = vunpack.c.l.b16 %v162
    %v202 = vunpack.c.l.b16 %v163
    %v203 = vunpack.c.l.b16 %v164
    %v204 = vunpack.c.l.b16 %v165
    %v205 = vunpack.c.l.b16 %v166
    %v206 = vpack.c.b16 %v191, %v190
    %v207 = vpack.c.b16 %v193, %v192
    %v208 = vpack.c.b16 %v195, %v194
    %v209 = vpack.c.b16 %v197, %v196
    %v210 = vpack.c.b16 %v199, %v198
    %v211 = vpack.c.b16 %v201, %v200
    %v212 = vpack.c.b16 %v203, %v202
    %v213 = vpack.c.b16 %v205, %v204
    %222 = vmatprep.subr.bf16.mxu0 0
    %223 = vmatpush1.bf16.msra.mxu0 %v206
    %224 = vmatprep.subr.bf16.mxu0 0
    %225 = vmatpush1.bf16.msra.mxu0 %v207
    %226 = vmatprep.subr.bf16.mxu0 0
    %227 = vmatpush1.bf16.msra.mxu0 %v208
    %228 = vmatprep.subr.bf16.mxu0 0
    %229 = vmatpush1.bf16.msra.mxu0 %v209
    %230 = vmatprep.subr.bf16.mxu0 0
    %231 = vmatpush1.bf16.msra.mxu0 %v210
    %232 = vmatprep.subr.bf16.mxu0 0
    %233 = vmatpush1.bf16.msra.mxu0 %v211
    %234 = vmatprep.subr.bf16.mxu0 0
    %235 = vmatpush1.bf16.msra.mxu0 %v212
    %236 = vmatprep.subr.bf16.mxu0 0
    %237 = vmatpush1.bf16.msra.mxu0 %v213
    %238 = vmatprep.subr.bf16.mxu0 0
    %239 = vmatpush1.bf16.msra.mxu0 0
    %240 = vmatprep.subr.bf16.mxu0 0
    %241 = vmatpush1.bf16.msra.mxu0 0
    %242 = vmatprep.subr.bf16.mxu0 0
    %243 = vmatpush1.bf16.msra.mxu0 0
    %244 = vmatprep.subr.bf16.mxu0 0
    %245 = vmatpush1.bf16.msra.mxu0 0
    %246 = vmatprep.subr.bf16.mxu0 0
    %247 = vmatpush1.bf16.msra.mxu0 0
    %248 = vmatprep.subr.bf16.mxu0 0
    %249 = vmatpush1.bf16.msra.mxu0 0
    %250 = vmatprep.subr.bf16.mxu0 0
    %251 = vmatpush1.bf16.msra.mxu0 0
    %252 = vmatprep.subr.bf16.mxu0 0
    %253 = vmatpush1.bf16.msra.mxu0 0
    %254 = vmatprep.mubr.bf16.mxu0 0
    %255 = vmatmul.mubr.bf16.gmra.mrb[0].mxu0 %v150
    %v256 = vpop.f32.mrb[0].mxu0
    %v257 = vadd.f32 %v172, %v256
    %v258 = vpop.f32.mrb[0].mxu0
    %v259 = vpop.f32.mrb[0].mxu0
    %v260 = vpop.f32.mrb[0].mxu0
    %261 = vdwg.mxu0
    %v262 = vpack.c.bf16 %v257, %v257
    %v263 = vld [vmem:[#allocation8] sm:$0xf]
    %v264 = vld [vmem:[#allocation8 + $0x4] sm:$0xf]
    %v265 = vld [vmem:[#allocation8 + $0x8] sm:$0xf]
    %v266 = vld [vmem:[#allocation8 + $0xc] sm:$0xf]
    %v267 = vld [vmem:[#allocation8 + $0x10] sm:$0xf]
    %v268 = vld [vmem:[#allocation8 + $0x14] sm:$0xf]
    %v269 = vld [vmem:[#allocation8 + $0x18] sm:$0xf]
    %v270 = vld [vmem:[#allocation8 + $0x1c] sm:$0xf]
    %v271 = vld [vmem:[#allocation8 + $0x20] sm:$0xf]
    %v272 = vld [vmem:[#allocation8 + $0x24] sm:$0xf]
    %v273 = vld [vmem:[#allocation8 + $0x28] sm:$0xf]
    %v274 = vld [vmem:[#allocation8 + $0x2c] sm:$0xf]
    %v275 = vld [vmem:[#allocation8 + $0x30] sm:$0xf]
    %v276 = vld [vmem:[#allocation8 + $0x34] sm:$0xf]
    %v277 = vld [vmem:[#allocation8 + $0x38] sm:$0xf]
    %v278 = vld [vmem:[#allocation8 + $0x3c] sm:$0xf]
    %v279 = vld [vmem:[%s6] sm:$0x1]
    %v281 = vlaneseq
    %v282 = vshrl.u32 %v281, 7
    %v283 = vsub.s32 0, %v282
    %v284 = vrot.slane %v279, %v283
    %v302 = vunpack.c.l.b16 %v263
    %v303 = vunpack.c.l.b16 %v264
    %v304 = vunpack.c.l.b16 %v265
    %v305 = vunpack.c.l.b16 %v266
    %v306 = vunpack.c.l.b16 %v267
    %v307 = vunpack.c.l.b16 %v268
    %v308 = vunpack.c.l.b16 %v269
    %v309 = vunpack.c.l.b16 %v270
    %v310 = vunpack.c.l.b16 %v271
    %v311 = vunpack.c.l.b16 %v272
    %v312 = vunpack.c.l.b16 %v273
    %v313 = vunpack.c.l.b16 %v274
    %v314 = vunpack.c.l.b16 %v275
    %v315 = vunpack.c.l.b16 %v276
    %v316 = vunpack.c.l.b16 %v277
    %v317 = vunpack.c.l.b16 %v278
    %v318 = vpack.c.b16 %v303, %v302
    %v319 = vpack.c.b16 %v305, %v304
    %v320 = vpack.c.b16 %v307, %v306
    %v321 = vpack.c.b16 %v309, %v308
    %v322 = vpack.c.b16 %v311, %v310
    %v323 = vpack.c.b16 %v313, %v312
    %v324 = vpack.c.b16 %v315, %v314
    %v325 = vpack.c.b16 %v317, %v316
    %334 = vmatprep.subr.bf16.mxu0 0
    %335 = vmatpush1.bf16.msra.mxu0 %v318
    %336 = vmatprep.subr.bf16.mxu0 0
    %337 = vmatpush1.bf16.msra.mxu0 %v319
    %338 = vmatprep.subr.bf16.mxu0 0
    %339 = vmatpush1.bf16.msra.mxu0 %v320
    %340 = vmatprep.subr.bf16.mxu0 0
    %341 = vmatpush1.bf16.msra.mxu0 %v321
    %342 = vmatprep.subr.bf16.mxu0 0
    %343 = vmatpush1.bf16.msra.mxu0 %v322
    %344 = vmatprep.subr.bf16.mxu0 0
    %345 = vmatpush1.bf16.msra.mxu0 %v323
    %346 = vmatprep.subr.bf16.mxu0 0
    %347 = vmatpush1.bf16.msra.mxu0 %v324
    %348 = vmatprep.subr.bf16.mxu0 0
    %349 = vmatpush1.bf16.msra.mxu0 %v325
    %350 = vmatprep.subr.bf16.mxu0 0
    %351 = vmatpush1.bf16.msra.mxu0 0
    %352 = vmatprep.subr.bf16.mxu0 0
    %353 = vmatpush1.bf16.msra.mxu0 0
    %354 = vmatprep.subr.bf16.mxu0 0
    %355 = vmatpush1.bf16.msra.mxu0 0
    %356 = vmatprep.subr.bf16.mxu0 0
    %357 = vmatpush1.bf16.msra.mxu0 0
    %358 = vmatprep.subr.bf16.mxu0 0
    %359 = vmatpush1.bf16.msra.mxu0 0
    %360 = vmatprep.subr.bf16.mxu0 0
    %361 = vmatpush1.bf16.msra.mxu0 0
    %362 = vmatprep.subr.bf16.mxu0 0
    %363 = vmatpush1.bf16.msra.mxu0 0
    %364 = vmatprep.subr.bf16.mxu0 0
    %365 = vmatpush1.bf16.msra.mxu0 0
    %366 = vmatprep.mubr.bf16.mxu0 0
    %367 = vmatmul.mubr.bf16.gmra.mrb[0].mxu0 %v262
    %v368 = vpop.f32.mrb[0].mxu0
    %v369 = vadd.f32 %v284, %v368
    %v370 = vpop.f32.mrb[0].mxu0
    %v371 = vpop.f32.mrb[0].mxu0
    %v372 = vpop.f32.mrb[0].mxu0
    %373 = vdwg.mxu0
    %v374 = vmax.f32 %v369, 0.0
    %375 = vst [vmem:[#allocation10] sm:$0xff] %v374
    // Predicated region
    $region46: #{tpu_custom_call.1} parent=1 // pred_check
      _
    $region47: #{tpu_custom_call.1} parent=1 // pred_check_branch
      %377 = sbr.rel (0) target = $region49
    $region48: #{tpu_custom_call.1} parent=1 // pred_region
      %s379 = ssub.s32 128, 128
      %380 = vsyncadd [#allocation4], %s379
      %s382 = sshll.u32 [#allocation10], 4
      %s383 = int_to_ptr.vmem [resolvable:$true] %s382
      %385 = dma.vmem_to_hbm [thread:$0]  %s383, 128, %s7, [#allocation4]
    $region49: #{tpu_custom_call.1} parent=1 // pred_fallthru
      _
    // Predicated region
    $region50: #{tpu_custom_call.1} parent=1 // pred_check
      _
    $region51: #{tpu_custom_call.1} parent=1 // pred_check_branch
      %387 = sbr.rel (0) target = $region53
    $region52: #{tpu_custom_call.1} parent=1 // pred_region
      %388 = dma.done [#allocation4], 128
    $region53: #{tpu_custom_call.1} parent=1 // pred_fallthru
      _
    %389 = vsyncpa [#allocation3], 1
    %390 = vsyncpa [#allocation6], 1
    %391 = vsyncpa [#allocation9], 1
    %392 = vsyncpa [#allocation4], 1

// kernel: tpu_custom_call.1
$region0: #{tpu_custom_call.1}
  #allocation0 [shape = 'u32[]', space=smem, size = 0x4, offset = 0x4, fixed_abs, tag = 'smem constant byte address 0x4 - core index']
  #allocation1 [shape = 'u32[144,128]{1,0:T(1,128)}', space=vmem, size = 0x12000, scoped, tag = 'internal scratch']
  %s0 = inlined_call_operand.hbm [shape: f32[8,32], index: 0, kind: input, shape index: {}]
  %s1 = inlined_call_operand.hbm [shape: bf16[32,128], index: 1, kind: input, shape index: {}]
  %s2 = inlined_call_operand.vmem [shape: f32[1,128], index: 2, kind: input, shape index: {}]
  %s3 = inlined_call_operand.hbm [shape: bf16[128,128], index: 3, kind: input, shape index: {}]
  %s4 = inlined_call_operand.vmem [shape: f32[1,128], index: 4, kind: input, shape index: {}]
  %s5 = inlined_call_operand.hbm [shape: bf16[128,128], index: 5, kind: input, shape index: {}]
  %s6 = inlined_call_operand.vmem [shape: f32[1,128], index: 6, kind: input, shape index: {}]
  %s7 = inlined_call_operand.hbm [shape: f32[8,128], index: 7, kind: output, shape index: {}]
  %s8 = sld [smem:[#allocation0]]
  $region54: #{tpu_custom_call.1} parent=0
    _
  %s10 = ssub.s32 1, %s8
  %s11 = scalar_select 0, %s10, %s8
  $region1: #{tpu_custom_call.1} parent=0
    #allocation2 [shape = 'u8[4096]{0}', space=vmem, size = 0x1000, scoped, tag = 'input window, operand 0, single buffered']
    #allocation3 [shape = 's32[1]{0}', space=sflag, size = 0x4, scoped, tag = 'scoped memory for tpu_custom_call.1']
    #allocation4 [shape = 's32[1]{0}', space=sflag, size = 0x4, scoped, tag = 'scoped memory for tpu_custom_call.1']
    #allocation5 [shape = 'u8[8192]{0}', space=vmem, size = 0x2000, scoped, tag = 'input window, operand 1, single buffered']
    #allocation6 [shape = 's32[1]{0}', space=sflag, size = 0x4, scoped, tag = 'scoped memory for tpu_custom_call.1']
    #allocation7 [shape = 'u8[32768]{0}', space=vmem, size = 0x8000, scoped, tag = 'input window, operand 3, single buffered']
    #allocation8 [shape = 'u8[32768]{0}', space=vmem, size = 0x8000, scoped, tag = 'input window, operand 5, single buffered']
    #allocation9 [shape = 's32[1]{0}', space=sflag, size = 0x4, scoped, tag = 'scoped memory for tpu_custom_call.1']
    #allocation10 [shape = 'u8[4096]{0}', space=vmem, size = 0x1000, scoped, tag = 'output window, operand 0, single buffered']
    %12 = vsyncpa [#allocation3], 0
    %13 = vsyncpa [#allocation6], 0
    %14 = vsyncpa [#allocation9], 0
    %15 = vsyncpa [#allocation4], 0
    // Predicated region
    $region2: #{tpu_custom_call.1} parent=1 // pred_check
      _
    $region3: #{tpu_custom_call.1} parent=1 // pred_check_branch
      %17 = sbr.rel (0) target = $region5
    $region4: #{tpu_custom_call.1} parent=1 // pred_region
      %s19 = ssub.s32 128, 128
      %20 = vsyncadd [#allocation3], %s19
      %s22 = sshll.u32 [#allocation2], 4
      %s23 = int_to_ptr.vmem [resolvable:$true] %s22
      %25 = dma.hbm_to_vmem [thread:$0]  %s0, 128, %s23, [#allocation3]
    $region5: #{tpu_custom_call.1} parent=1 // pred_fallthru
      _
    // Predicated region
    $region6: #{tpu_custom_call.1} parent=1 // pred_check
      _
    $region7: #{tpu_custom_call.1} parent=1 // pred_check_branch
      %27 = sbr.rel (0) target = $region9
    $region8: #{tpu_custom_call.1} parent=1 // pred_region
      %s29 = ssub.s32 256, 256
      %30 = vsyncadd [#allocation6], %s29
      %s31 = sshll.u32 [#allocation5], 4
      %s32 = int_to_ptr.vmem [resolvable:$true] %s31
      %37 = dma.hbm_to_vmem [thread:$0]  %s1, 256, %s32, [#allocation6], 64, 64, 4
    $region9: #{tpu_custom_call.1} parent=1 // pred_fallthru
      _
    // Predicated region
    $region10: #{tpu_custom_call.1} parent=1 // pred_check
      _
    $region11: #{tpu_custom_call.1} parent=1 // pred_check_branch
      %39 = sbr.rel (0) target = $region13
    $region12: #{tpu_custom_call.1} parent=1 // pred_region
      _
    $region13: #{tpu_custom_call.1} parent=1 // pred_fallthru
      _
    // Predicated region
    $region14: #{tpu_custom_call.1} parent=1 // pred_check
      _
    $region15: #{tpu_custom_call.1} parent=1 // pred_check_branch
      %41 = sbr.rel (0) target = $region17
    $region16: #{tpu_custom_call.1} parent=1 // pred_region
      %s43 = ssub.s32 1024, 1024
      %44 = vsyncadd [#allocation6], %s43
      %s45 = sshll.u32 [#allocation7], 4
      %s46 = int_to_ptr.vmem [resolvable:$true] %s45
      %51 = dma.hbm_to_vmem [thread:$0]  %s3, 1024, %s46, [#allocation6], 64, 64, 4
    $region17: #{tpu_custom_call.1} parent=1 // pred_fallthru
      _
    // Predicated region
    $region18: #{tpu_custom_call.1} parent=1 // pred_check
      _
    $region19: #{tpu_custom_call.1} parent=1 // pred_check_branch
      %53 = sbr.rel (0) target = $region21
    $region20: #{tpu_custom_call.1} parent=1 // pred_region
      _
    $region21: #{tpu_custom_call.1} parent=1 // pred_fallthru
      _
    // Predicated region
    $region22: #{tpu_custom_call.1} parent=1 // pred_check
      _
    $region23: #{tpu_custom_call.1} parent=1 // pred_check_branch
      %55 = sbr.rel (0) target = $region25
    $region24: #{tpu_custom_call.1} parent=1 // pred_region
      %s57 = ssub.s32 1024, 1024
      %58 = vsyncadd [#allocation9], %s57
      %s59 = sshll.u32 [#allocation8], 4
      %s60 = int_to_ptr.vmem [resolvable:$true] %s59
      %65 = dma.hbm_to_vmem [thread:$0]  %s5, 1024, %s60, [#allocation9], 64, 64, 4
    $region25: #{tpu_custom_call.1} parent=1 // pred_fallthru
      _
    // Predicated region
    $region26: #{tpu_custom_call.1} parent=1 // pred_check
      _
    $region27: #{tpu_custom_call.1} parent=1 // pred_check_branch
      %67 = sbr.rel (0) target = $region29
    $region28: #{tpu_custom_call.1} parent=1 // pred_region
      _
    $region29: #{tpu_custom_call.1} parent=1 // pred_fallthru
      _
    // Predicated region
    $region30: #{tpu_custom_call.1} parent=1 // pred_check
      _
    $region31: #{tpu_custom_call.1} parent=1 // pred_check_branch
      %69 = sbr.rel (0) target = $region33
    $region32: #{tpu_custom_call.1} parent=1 // pred_region
      %70 = dma.done [#allocation3], 128
    $region33: #{tpu_custom_call.1} parent=1 // pred_fallthru
      _
    // Predicated region
    $region34: #{tpu_custom_call.1} parent=1 // pred_check
      _
    $region35: #{tpu_custom_call.1} parent=1 // pred_check_branch
      %72 = sbr.rel (0) target = $region37
    $region36: #{tpu_custom_call.1} parent=1 // pred_region
      %73 = dma.done [#allocation6], 256
    $region37: #{tpu_custom_call.1} parent=1 // pred_fallthru
      _
    // Predicated region
    $region38: #{tpu_custom_call.1} parent=1 // pred_check
      _
    $region39: #{tpu_custom_call.1} parent=1 // pred_check_branch
      %75 = sbr.rel (0) target = $region41
    $region40: #{tpu_custom_call.1} parent=1 // pred_region
      %76 = dma.done [#allocation6], 1024
    $region41: #{tpu_custom_call.1} parent=1 // pred_fallthru
      _
    // Predicated region
    $region42: #{tpu_custom_call.1} parent=1 // pred_check
      _
    $region43: #{tpu_custom_call.1} parent=1 // pred_check_branch
      %78 = sbr.rel (0) target = $region45
    $region44: #{tpu_custom_call.1} parent=1 // pred_region
      %79 = dma.done [#allocation9], 1024
    $region45: #{tpu_custom_call.1} parent=1 // pred_fallthru
      _
    %v81 = vld [vmem:[#allocation2] sm:$0xff]
    %v82 = vpack.c.bf16 %v81, %v81
    %v83 = vld [vmem:[#allocation5] sm:$0xf]
    %v84 = vld [vmem:[#allocation5 + $0x4] sm:$0xf]
    %v85 = vld [vmem:[#allocation5 + $0x8] sm:$0xf]
    %v86 = vld [vmem:[#allocation5 + $0xc] sm:$0xf]
    %v87 = vld [vmem:[%s2] sm:$0x1]
    %v89 = vlaneseq
    %v90 = vshrl.u32 %v89, 7
    %v91 = vsub.s32 0, %v90
    %v92 = vrot.slane %v87, %v91
    %v98 = vunpack.c.l.b16 %v83
    %v99 = vunpack.c.l.b16 %v84
    %v100 = vunpack.c.l.b16 %v85
    %v101 = vunpack.c.l.b16 %v86
    %v102 = vpack.c.b16 %v99, %v98
    %v103 = vpack.c.b16 %v101, %v100
    %vm106 = vcmask 261120
    %v108 = vsel %vm106, %v82, 0
    %110 = vmatprep.subr.bf16.mxu0 0
    %111 = vmatpush1.bf16.msra.mxu0 %v102
    %112 = vmatprep.subr.bf16.mxu0 0
    %113 = vmatpush1.bf16.msra.mxu0 %v103
    %114 = vmatprep.subr.bf16.mxu0 0
    %115 = vmatpush1.bf16.msra.mxu0 0
    %116 = vmatprep.subr.bf16.mxu0 0
    %117 = vmatpush1.bf16.msra.mxu0 0
    %118 = vmatprep.subr.bf16.mxu0 0
    %119 = vmatpush1.bf16.msra.mxu0 0
    %120 = vmatprep.subr.bf16.mxu0 0
    %121 = vmatpush1.bf16.msra.mxu0 0
    %122 = vmatprep.subr.bf16.mxu0 0
    %123 = vmatpush1.bf16.msra.mxu0 0
    %124 = vmatprep.subr.bf16.mxu0 0
    %125 = vmatpush1.bf16.msra.mxu0 0
    %126 = vmatprep.subr.bf16.mxu0 0
    %127 = vmatpush1.bf16.msra.mxu0 0
    %128 = vmatprep.subr.bf16.mxu0 0
    %129 = vmatpush1.bf16.msra.mxu0 0
    %130 = vmatprep.subr.bf16.mxu0 0
    %131 = vmatpush1.bf16.msra.mxu0 0
    %132 = vmatprep.subr.bf16.mxu0 0
    %133 = vmatpush1.bf16.msra.mxu0 0
    %134 = vmatprep.subr.bf16.mxu0 0
    %135 = vmatpush1.bf16.msra.mxu0 0
    %136 = vmatprep.subr.bf16.mxu0 0
    %137 = vmatpush1.bf16.msra.mxu0 0
    %138 = vmatprep.subr.bf16.mxu0 0
    %139 = vmatpush1.bf16.msra.mxu0 0
    %140 = vmatprep.subr.bf16.mxu0 0
    %141 = vmatpush1.bf16.msra.mxu0 0
    %142 = vmatprep.mubr.bf16.mxu0 0
    %143 = vmatmul.mubr.bf16.gmra.mrb[0].mxu0 %v108
    %v144 = vpop.f32.mrb[0].mxu0
    %v145 = vadd.f32 %v92, %v144
    %v146 = vpop.f32.mrb[0].mxu0
    %v147 = vpop.f32.mrb[0].mxu0
    %v148 = vpop.f32.mrb[0].mxu0
    %149 = vdwg.mxu0
    %v150 = vpack.c.bf16 %v145, %v145
    %v151 = vld [vmem:[#allocation7] sm:$0xf]
    %v152 = vld [vmem:[#allocation7 + $0x4] sm:$0xf]
    %v153 = vld [vmem:[#allocation7 + $0x8] sm:$0xf]
    %v154 = vld [vmem:[#allocation7 + $0xc] sm:$0xf]
    %v155 = vld [vmem:[#allocation7 + $0x10] sm:$0xf]
    %v156 = vld [vmem:[#allocation7 + $0x14] sm:$0xf]
    %v157 = vld [vmem:[#allocation7 + $0x18] sm:$0xf]
    %v158 = vld [vmem:[#allocation7 + $0x1c] sm:$0xf]
    %v159 = vld [vmem:[#allocation7 + $0x20] sm:$0xf]
    %v160 = vld [vmem:[#allocation7 + $0x24] sm:$0xf]
    %v161 = vld [vmem:[#allocation7 + $0x28] sm:$0xf]
    %v162 = vld [vmem:[#allocation7 + $0x2c] sm:$0xf]
    %v163 = vld [vmem:[#allocation7 + $0x30] sm:$0xf]
    %v164 = vld [vmem:[#allocation7 + $0x34] sm:$0xf]
    %v165 = vld [vmem:[#allocation7 + $0x38] sm:$0xf]
    %v166 = vld [vmem:[#allocation7 + $0x3c] sm:$0xf]
    %v167 = vld [vmem:[%s4] sm:$0x1]
    %v169 = vlaneseq
    %v170 = vshrl.u32 %v169, 7
    %v171 = vsub.s32 0, %v170
    %v172 = vrot.slane %v167, %v171
    %v190 = vunpack.c.l.b16 %v151
    %v191 = vunpack.c.l.b16 %v152
    %v192 = vunpack.c.l.b16 %v153
    %v193 = vunpack.c.l.b16 %v154
    %v194 = vunpack.c.l.b16 %v155
    %v195 = vunpack.c.l.b16 %v156
    %v196 = vunpack.c.l.b16 %v157
    %v197 = vunpack.c.l.b16 %v158
    %v198 = vunpack.c.l.b16 %v159
    %v199 = vunpack.c.l.b16 %v160
    %v200 = vunpack.c.l.b16 %v161
    %v201 = vunpack.c.l.b16 %v162
    %v202 = vunpack.c.l.b16 %v163
    %v203 = vunpack.c.l.b16 %v164
    %v204 = vunpack.c.l.b16 %v165
    %v205 = vunpack.c.l.b16 %v166
    %v206 = vpack.c.b16 %v191, %v190
    %v207 = vpack.c.b16 %v193, %v192
    %v208 = vpack.c.b16 %v195, %v194
    %v209 = vpack.c.b16 %v197, %v196
    %v210 = vpack.c.b16 %v199, %v198
    %v211 = vpack.c.b16 %v201, %v200
    %v212 = vpack.c.b16 %v203, %v202
    %v213 = vpack.c.b16 %v205, %v204
    %222 = vmatprep.subr.bf16.mxu0 0
    %223 = vmatpush1.bf16.msra.mxu0 %v206
    %224 = vmatprep.subr.bf16.mxu0 0
    %225 = vmatpush1.bf16.msra.mxu0 %v207
    %226 = vmatprep.subr.bf16.mxu0 0
    %227 = vmatpush1.bf16.msra.mxu0 %v208
    %228 = vmatprep.subr.bf16.mxu0 0
    %229 = vmatpush1.bf16.msra.mxu0 %v209
    %230 = vmatprep.subr.bf16.mxu0 0
    %231 = vmatpush1.bf16.msra.mxu0 %v210
    %232 = vmatprep.subr.bf16.mxu0 0
    %233 = vmatpush1.bf16.msra.mxu0 %v211
    %234 = vmatprep.subr.bf16.mxu0 0
    %235 = vmatpush1.bf16.msra.mxu0 %v212
    %236 = vmatprep.subr.bf16.mxu0 0
    %237 = vmatpush1.bf16.msra.mxu0 %v213
    %238 = vmatprep.subr.bf16.mxu0 0
    %239 = vmatpush1.bf16.msra.mxu0 0
    %240 = vmatprep.subr.bf16.mxu0 0
    %241 = vmatpush1.bf16.msra.mxu0 0
    %242 = vmatprep.subr.bf16.mxu0 0
    %243 = vmatpush1.bf16.msra.mxu0 0
    %244 = vmatprep.subr.bf16.mxu0 0
    %245 = vmatpush1.bf16.msra.mxu0 0
    %246 = vmatprep.subr.bf16.mxu0 0
    %247 = vmatpush1.bf16.msra.mxu0 0
    %248 = vmatprep.subr.bf16.mxu0 0
    %249 = vmatpush1.bf16.msra.mxu0 0
    %250 = vmatprep.subr.bf16.mxu0 0
    %251 = vmatpush1.bf16.msra.mxu0 0
    %252 = vmatprep.subr.bf16.mxu0 0
    %253 = vmatpush1.bf16.msra.mxu0 0
    %254 = vmatprep.mubr.bf16.mxu0 0
    %255 = vmatmul.mubr.bf16.gmra.mrb[0].mxu0 %v150
    %v256 = vpop.f32.mrb[0].mxu0
    %v257 = vadd.f32 %v172, %v256
    %v258 = vpop.f32.mrb[0].mxu0
    %v259 = vpop.f32.mrb[0].mxu0
    %v260 = vpop.f32.mrb[0].mxu0
    %261 = vdwg.mxu0
    %v262 = vpack.c.bf16 %v257, %v257
    %v263 = vld [vmem:[#allocation8] sm:$0xf]
    %v264 = vld [vmem:[#allocation8 + $0x4] sm:$0xf]
    %v265 = vld [vmem:[#allocation8 + $0x8] sm:$0xf]
    %v266 = vld [vmem:[#allocation8 + $0xc] sm:$0xf]
    %v267 = vld [vmem:[#allocation8 + $0x10] sm:$0xf]
    %v268 = vld [vmem:[#allocation8 + $0x14] sm:$0xf]
    %v269 = vld [vmem:[#allocation8 + $0x18] sm:$0xf]
    %v270 = vld [vmem:[#allocation8 + $0x1c] sm:$0xf]
    %v271 = vld [vmem:[#allocation8 + $0x20] sm:$0xf]
    %v272 = vld [vmem:[#allocation8 + $0x24] sm:$0xf]
    %v273 = vld [vmem:[#allocation8 + $0x28] sm:$0xf]
    %v274 = vld [vmem:[#allocation8 + $0x2c] sm:$0xf]
    %v275 = vld [vmem:[#allocation8 + $0x30] sm:$0xf]
    %v276 = vld [vmem:[#allocation8 + $0x34] sm:$0xf]
    %v277 = vld [vmem:[#allocation8 + $0x38] sm:$0xf]
    %v278 = vld [vmem:[#allocation8 + $0x3c] sm:$0xf]
    %v279 = vld [vmem:[%s6] sm:$0x1]
    %v281 = vlaneseq
    %v282 = vshrl.u32 %v281, 7
    %v283 = vsub.s32 0, %v282
    %v284 = vrot.slane %v279, %v283
    %v302 = vunpack.c.l.b16 %v263
    %v303 = vunpack.c.l.b16 %v264
    %v304 = vunpack.c.l.b16 %v265
    %v305 = vunpack.c.l.b16 %v266
    %v306 = vunpack.c.l.b16 %v267
    %v307 = vunpack.c.l.b16 %v268
    %v308 = vunpack.c.l.b16 %v269
    %v309 = vunpack.c.l.b16 %v270
    %v310 = vunpack.c.l.b16 %v271
    %v311 = vunpack.c.l.b16 %v272
    %v312 = vunpack.c.l.b16 %v273
    %v313 = vunpack.c.l.b16 %v274
    %v314 = vunpack.c.l.b16 %v275
    %v315 = vunpack.c.l.b16 %v276
    %v316 = vunpack.c.l.b16 %v277
    %v317 = vunpack.c.l.b16 %v278
    %v318 = vpack.c.b16 %v303, %v302
    %v319 = vpack.c.b16 %v305, %v304
    %v320 = vpack.c.b16 %v307, %v306
    %v321 = vpack.c.b16 %v309, %v308
    %v322 = vpack.c.b16 %v311, %v310
    %v323 = vpack.c.b16 %v313, %v312
    %v324 = vpack.c.b16 %v315, %v314
    %v325 = vpack.c.b16 %v317, %v316
    %334 = vmatprep.subr.bf16.mxu0 0
    %335 = vmatpush1.bf16.msra.mxu0 %v318
    %336 = vmatprep.subr.bf16.mxu0 0
    %337 = vmatpush1.bf16.msra.mxu0 %v319
    %338 = vmatprep.subr.bf16.mxu0 0
    %339 = vmatpush1.bf16.msra.mxu0 %v320
    %340 = vmatprep.subr.bf16.mxu0 0
    %341 = vmatpush1.bf16.msra.mxu0 %v321
    %342 = vmatprep.subr.bf16.mxu0 0
    %343 = vmatpush1.bf16.msra.mxu0 %v322
    %344 = vmatprep.subr.bf16.mxu0 0
    %345 = vmatpush1.bf16.msra.mxu0 %v323
    %346 = vmatprep.subr.bf16.mxu0 0
    %347 = vmatpush1.bf16.msra.mxu0 %v324
    %348 = vmatprep.subr.bf16.mxu0 0
    %349 = vmatpush1.bf16.msra.mxu0 %v325
    %350 = vmatprep.subr.bf16.mxu0 0
    %351 = vmatpush1.bf16.msra.mxu0 0
    %352 = vmatprep.subr.bf16.mxu0 0
    %353 = vmatpush1.bf16.msra.mxu0 0
    %354 = vmatprep.subr.bf16.mxu0 0
    %355 = vmatpush1.bf16.msra.mxu0 0
    %356 = vmatprep.subr.bf16.mxu0 0
    %357 = vmatpush1.bf16.msra.mxu0 0
    %358 = vmatprep.subr.bf16.mxu0 0
    %359 = vmatpush1.bf16.msra.mxu0 0
    %360 = vmatprep.subr.bf16.mxu0 0
    %361 = vmatpush1.bf16.msra.mxu0 0
    %362 = vmatprep.subr.bf16.mxu0 0
    %363 = vmatpush1.bf16.msra.mxu0 0
    %364 = vmatprep.subr.bf16.mxu0 0
    %365 = vmatpush1.bf16.msra.mxu0 0
    %366 = vmatprep.mubr.bf16.mxu0 0
    %367 = vmatmul.mubr.bf16.gmra.mrb[0].mxu0 %v262
    %v368 = vpop.f32.mrb[0].mxu0
    %v369 = vadd.f32 %v284, %v368
    %v370 = vpop.f32.mrb[0].mxu0
    %v371 = vpop.f32.mrb[0].mxu0
    %v372 = vpop.f32.mrb[0].mxu0
    %373 = vdwg.mxu0
    %v374 = vmax.f32 %v369, 0.0
    %375 = vst [vmem:[#allocation10] sm:$0xff] %v374
    // Predicated region
    $region46: #{tpu_custom_call.1} parent=1 // pred_check
      _
    $region47: #{tpu_custom_call.1} parent=1 // pred_check_branch
      %377 = sbr.rel (0) target = $region49
    $region48: #{tpu_custom_call.1} parent=1 // pred_region
      %s379 = ssub.s32 128, 128
      %380 = vsyncadd [#allocation4], %s379
      %s382 = sshll.u32 [#allocation10], 4
      %s383 = int_to_ptr.vmem [resolvable:$true] %s382
      %385 = dma.vmem_to_hbm [thread:$0]  %s383, 128, %s7, [#allocation4]
    $region49: #{tpu_custom_call.1} parent=1 // pred_fallthru
      _
    // Predicated region
    $region50: #{tpu_custom_call.1} parent=1 // pred_check
      _
    $region51: #{tpu_custom_call.1} parent=1 // pred_check_branch
      %387 = sbr.rel (0) target = $region53
    $region52: #{tpu_custom_call.1} parent=1 // pred_region
      %388 = dma.done [#allocation4], 128
    $region53: #{tpu_custom_call.1} parent=1 // pred_fallthru
      _
    %389 = vsyncpa [#allocation3], 1
    %390 = vsyncpa [#allocation6], 1
    %391 = vsyncpa [#allocation9], 1
    %392 = vsyncpa [#allocation4], 1

</llo_original>
